<compile_context>
chip_gen: v7x
topology: tpu7x:2x2x1
jax: 0.10.0
libtpu: 0.0.40
codegen_flags: <defaults>
</compile_context>

<pallas_src>
import functools

import jax
import jax.numpy as jnp
from jax import lax
from jax.experimental import pallas as pl
from jax.experimental.pallas import tpu as pltpu

EPS = 1e-5
LANE = 128
SUB = 16          # bf16 packs 16 rows per sublane group -> batch tiles % 16 == 0


def _silu(h):
    # sigmoid via tanh: the transcendental rides the EUP slot, no VPU divide.
    return h * (0.5 * (jnp.tanh(0.5 * h) + 1.0))


def _round_up(v, m):
    return (v + m - 1) // m * m


def _pad2(a, rows, cols):
    return jnp.pad(a, ((0, rows - a.shape[0]), (0, cols - a.shape[1])))


def _vmem_limit_bytes():
    phys = 64 * 1024 * 1024                       # conservative default (v7x)
    try:
        phys = int(pltpu.get_tpu_info().vmem_capacity_bytes)
    except Exception:
        pass
    return int(min(phys * 3 // 4, 100 * 1024 * 1024))


def _pick_tile_n(n, din_p, h4_p, h2_p, dout_p, budget):
    """Largest batch tile whose worst pass fits the VMEM budget (with margin)."""
    for t in (1024, 512, 256, 128, 64, 32, 16):
        # double-buffered activation tiles, (worst-case) double-buffered weights,
        # plus f32 live intermediates inside the kernel body.
        a = 2 * t * din_p * 2 + 2 * t * h4_p * 2 + 2 * din_p * h4_p * 2 + t * h4_p * 4
        b = (2 * t * h4_p * 2 + 2 * t * h2_p * 2 + 2 * h4_p * h2_p * 2
             + t * (h4_p + h2_p) * 4)
        c = (2 * t * h2_p * 2 + 2 * t * dout_p * 4 + 2 * h2_p * dout_p * 2
             + t * (h2_p + dout_p) * 4)
        if int(1.25 * max(a, b, c)) <= budget:
            return min(t, _round_up(n, SUB))
    return min(16, _round_up(n, SUB))


# ---------------------------------------------------------------------------
# Kernels (each pass runs exactly one matmul; no recompute anywhere).
# ---------------------------------------------------------------------------
def _lin1_kernel(x_ref, w1_ref, h1_ref, s1_ref, ss1_ref):
    # lin1 on the MXU: bf16 operands, f32 accumulation.  lin1 bias dropped
    # (exactly cancelled by the BatchNorm mean subtraction).
    h1 = jnp.dot(x_ref[...], w1_ref[...], preferred_element_type=jnp.float32)
    h1b = h1.astype(jnp.bfloat16)
    h1_ref[...] = h1b                              # cache activation in HBM (bf16)
    hf = h1b.astype(jnp.float32)
    # Zero-padded batch rows give exactly-zero h1 rows (zero x rows, no bias),
    # so the bn1 partial statistics need no mask.  The per-tile row-reduce rides
    # the XLU slot under the MXU pushes (once per tile, not per step).
    s1_ref[0] = jnp.sum(hf, axis=0, keepdims=True)
    ss1_ref[0] = jnp.sum(hf * hf, axis=0, keepdims=True)


def _lin2_kernel(h1_ref, mu1_ref, rstd1_ref, w2_ref, h2_ref, s2_ref, ss2_ref,
                 *, has_pad, valid_last):
    a1 = _silu((h1_ref[...].astype(jnp.float32) - mu1_ref[...]) * rstd1_ref[...])
    h2 = jnp.dot(a1.astype(jnp.bfloat16), w2_ref[...],
                 preferred_element_type=jnp.float32)
    h2b = h2.astype(jnp.bfloat16)
    h2_ref[...] = h2b                              # cache activation in HBM (bf16)
    hf = h2b.astype(jnp.float32)

    s2_ref[0] = jnp.sum(hf, axis=0, keepdims=True)
    ss2_ref[0] = jnp.sum(hf * hf, axis=0, keepdims=True)

    if has_pad:
        # Padded batch rows are non-zero after bn1/SiLU; only the last tile can
        # contain them, so the mask is built and the stats re-written only there.
        @pl.when(pl.program_id(0) == pl.num_programs(0) - 1)
        def _():
            row = lax.broadcasted_iota(jnp.int32, (hf.shape[0], 1), 0)
            hm = jnp.where(row < valid_last, hf, 0.0)
            s2_ref[0] = jnp.sum(hm, axis=0, keepdims=True)
            ss2_ref[0] = jnp.sum(hm * hm, axis=0, keepdims=True)


def _apply_kernel(scale_ref, h2_ref, mu2_ref, rstd2_ref, w3_ref, b3_ref, o_ref):
    a2 = _silu((h2_ref[...].astype(jnp.float32) - mu2_ref[...]) * rstd2_ref[...])
    y = jnp.dot(a2.astype(jnp.bfloat16), w3_ref[...],
                preferred_element_type=jnp.float32)
    o_ref[...] = ((y + b3_ref[...]) * scale_ref[0, 0]).astype(o_ref.dtype)


# ---------------------------------------------------------------------------
# Wrapper helpers
# ---------------------------------------------------------------------------
def _weight_spec(shape, single_buffer):
    """Constant-index (VMEM-resident) weight spec; single-buffered if possible."""
    if single_buffer:
        return pl.BlockSpec(shape, lambda i: (0, 0), pipeline_mode=pl.Buffered(1))
    return pl.BlockSpec(shape, lambda i: (0, 0))


def _finalize_stats(s_part, ss_part, n_true):
    s = jnp.sum(s_part, axis=(0, 1))
    ss = jnp.sum(ss_part, axis=(0, 1))
    mu = s / n_true
    var = jnp.maximum(ss / n_true - mu * mu, 0.0)
    rstd = lax.rsqrt(var + EPS)
    return mu[None, :], rstd[None, :]


def _forward_padded(xp, w1p, w2p, w3p, b3p, scale_arr, n_true, tile_n,
                    single_buffer_weights):
    n_p, din_p = xp.shape
    h4_p = w1p.shape[1]
    h2_p = w2p.shape[1]
    dout_p = w3p.shape[1]
    num_tiles = n_p // tile_n
    has_pad = (n_p != n_true)
    valid_last = n_true - (num_tiles - 1) * tile_n
    vmem_limit = _vmem_limit_bytes()

    cparams = pltpu.CompilerParams(
        dimension_semantics=("parallel",),   # no carried state -> megacore OK
        vmem_limit_bytes=vmem_limit,
    )

    def row_spec(cols):
        return pl.BlockSpec((tile_n, cols), lambda i: (i, 0))

    def stat_spec(cols):
        return pl.BlockSpec((1, 1, cols), lambda i: (i, 0, 0))

    def vec_spec(cols):
        return pl.BlockSpec((1, cols), lambda i: (0, 0))

    # ---- pass A: lin1 + bn1 partial statistics ------------------------------
    h1b, s1p, ss1p = pl.pallas_call(
        _lin1_kernel,
        out_shape=(
            jax.ShapeDtypeStruct((n_p, h4_p), jnp.bfloat16),
            jax.ShapeDtypeStruct((num_tiles, 1, h4_p), jnp.float32),
            jax.ShapeDtypeStruct((num_tiles, 1, h4_p), jnp.float32),
        ),
        grid_spec=pltpu.PrefetchScalarGridSpec(
            num_scalar_prefetch=0,
            grid=(num_tiles,),
            in_specs=[
                row_spec(din_p),
                _weight_spec((din_p, h4_p), single_buffer_weights),
            ],
            out_specs=[row_spec(h4_p), stat_spec(h4_p), stat_spec(h4_p)],
        ),
        compiler_params=cparams,
    )(xp, w1p)

    mu1, rstd1 = _finalize_stats(s1p, ss1p, n_true)

    # ---- pass B: bn1-normalize + SiLU + lin2 + bn2 partial statistics --------
    h2b, s2p, ss2p = pl.pallas_call(
        functools.partial(_lin2_kernel, has_pad=has_pad, valid_last=valid_last),
        out_shape=(
            jax.ShapeDtypeStruct((n_p, h2_p), jnp.bfloat16),
            jax.ShapeDtypeStruct((num_tiles, 1, h2_p), jnp.float32),
            jax.ShapeDtypeStruct((num_tiles, 1, h2_p), jnp.float32),
        ),
        grid_spec=pltpu.PrefetchScalarGridSpec(
            num_scalar_prefetch=0,
            grid=(num_tiles,),
            in_specs=[
                row_spec(h4_p),
                vec_spec(h4_p),
                vec_spec(h4_p),
                _weight_spec((h4_p, h2_p), single_buffer_weights),
            ],
            out_specs=[row_spec(h2_p), stat_spec(h2_p), stat_spec(h2_p)],
        ),
        compiler_params=cparams,
    )(h1b, mu1, rstd1, w2p)

    mu2, rstd2 = _finalize_stats(s2p, ss2p, n_true)

    # ---- pass C: bn2-normalize + SiLU + lin3 (+ bias, * scale) ---------------
    y_pad = pl.pallas_call(
        _apply_kernel,
        out_shape=jax.ShapeDtypeStruct((n_p, dout_p), jnp.float32),
        grid_spec=pltpu.PrefetchScalarGridSpec(
            num_scalar_prefetch=0,
            grid=(num_tiles,),
            in_specs=[
                pl.BlockSpec(memory_space=pltpu.MemorySpace.SMEM),   # scale (1,1)
                row_spec(h2_p),
                vec_spec(h2_p),
                vec_spec(h2_p),
                _weight_spec((h2_p, dout_p), single_buffer_weights),
                vec_spec(dout_p),
            ],
            out_specs=row_spec(dout_p),
        ),
        compiler_params=cparams,
    )(scale_arr, h2b, mu2, rstd2, w3p, b3p)

    return y_pad


def output_block_forward(x, params, scale=1.0, tile_n=None):
    w1, b1, w2, b2, w3, b3 = params
    del b1, b2   # exactly cancelled by training-mode BatchNorm's mean subtraction
    n, din = x.shape
    h4 = w1.shape[1]
    h2 = w2.shape[1]
    dout = w3.shape[1]

    # Pad feature dims to 128-lane multiples (lane-dense matmuls and stores).
    din_p = _round_up(din, LANE)
    h4_p = _round_up(h4, LANE)
    h2_p = _round_up(h2, LANE)
    dout_p = _round_up(dout, LANE)

    # Generation-aware batch tiling (multiples of 16 for bf16 sublane packing).
    if tile_n is None:
        tile_n = _pick_tile_n(n, din_p, h4_p, h2_p, dout_p, _vmem_limit_bytes())
    tile_n = max(SUB, _round_up(int(tile_n), SUB))
    tile_n = min(tile_n, _round_up(n, SUB))
    n_p = _round_up(n, tile_n)

    # bf16 operands for the MXU; accumulation stays f32 inside the kernels.
    xp = _pad2(x, n_p, din_p).astype(jnp.bfloat16)
    w1p = _pad2(w1, din_p, h4_p).astype(jnp.bfloat16)
    w2p = _pad2(w2, h4_p, h2_p).astype(jnp.bfloat16)
    w3p = _pad2(w3, h2_p, dout_p).astype(jnp.bfloat16)
    b3p = jnp.pad(b3, (0, dout_p - dout)).reshape(1, dout_p).astype(jnp.float32)
    scale_arr = jnp.full((1, 1), scale, jnp.float32)

    try:
        y_pad = _forward_padded(xp, w1p, w2p, w3p, b3p, scale_arr, int(n),
                                tile_n, single_buffer_weights=True)
    except Exception:
        # TODO(synk): pipeline_mode=pl.Buffered(1) rejected by this JAX/Mosaic
        # build; fall back to default double-buffered weight operands.
        y_pad = _forward_padded(xp, w1p, w2p, w3p, b3p, scale_arr, int(n),
                                tile_n, single_buffer_weights=False)
    return y_pad[:n, :dout]


# ---------------- deterministic parameter construction ----------------------
def _xavier_uniform(key, fan_in, fan_out):
    # torch xavier_uniform_ on weight [out, in]; stored transposed [in, out].
    bound = float(jnp.sqrt(6.0 / (fan_in + fan_out)))
    return jax.random.uniform(key, (fan_in, fan_out), jnp.float32, -bound, bound)


def _linear_bias(key, fan_in, fan_out):
    bound = 1.0 / float(jnp.sqrt(fan_in))
    return jax.random.uniform(key, (fan_out,), jnp.float32, -bound, bound)


def make_params(key, in_dim, out_dim, hidden_dim):
    h4, h2 = hidden_dim * 4, hidden_dim * 2
    k = jax.random.split(key, 6)
    w1 = _xavier_uniform(k[0], in_dim, h4)
    b1 = _linear_bias(k[1], in_dim, h4)
    w2 = _xavier_uniform(k[2], h4, h2)
    b2 = _linear_bias(k[3], h4, h2)
    w3 = _xavier_uniform(k[4], h2, out_dim)
    b3 = _linear_bias(k[5], h2, out_dim)
    # bn1/bn2 gamma=1, beta=0 at init (fresh BatchNorm1d) -> identity affine.
    return (w1, b1, w2, b2, w3, b3)


# ---------------- pure-JAX references for sanity checks ----------------------
def reference_forward_f32(x, params, scale=1.0):
    """Full-f32 reference with the original module math (includes b1/b2)."""
    w1, b1, w2, b2, w3, b3 = params

    def bn(h):
        mu = jnp.mean(h, axis=0, keepdims=True)
        var = jnp.mean((h - mu) ** 2, axis=0, keepdims=True)
        return (h - mu) / jnp.sqrt(var + EPS)

    h = _silu(bn(x @ w1 + b1))
    h = _silu(bn(h @ w2 + b2))
    return scale * (h @ w3 + b3)


def reference_forward_bf16(x, params, scale=1.0):
    """Reference mirroring the kernel numerics (bf16 matmuls + bf16 activation
    caching + f32 accumulate / BN math)."""
    w1, b1, w2, b2, w3, b3 = params
    del b1, b2  # exactly cancelled by training-mode BatchNorm

    def dot(a, w):
        return jnp.dot(a.astype(jnp.bfloat16), w.astype(jnp.bfloat16),
                       preferred_element_type=jnp.float32)

    def bn(h):
        n = h.shape[0]
        mu = jnp.sum(h, axis=0, keepdims=True) / n
        var = jnp.maximum(jnp.sum(h * h, axis=0, keepdims=True) / n - mu * mu, 0.0)
        return (h - mu) * lax.rsqrt(var + EPS)

    h1 = dot(x, w1).astype(jnp.bfloat16).astype(jnp.float32)
    a1 = _silu(bn(h1))
    h2 = dot(a1, w2).astype(jnp.bfloat16).astype(jnp.float32)
    a2 = _silu(bn(h2))
    return scale * (dot(a2, w3) + b3)


if __name__ == "__main__":
    # hidden_dim=32 -> lin1: 32->128, lin2: 128->64, lin3: 64->16
    N, in_dim, hidden_dim, out_dim = 8, 32, 32, 16
    scale = 1.0

    key = jax.random.PRNGKey(0)
    kx, kp = jax.random.split(key)
    x = jax.random.normal(kx, (N, in_dim), jnp.float32)
    params = make_params(kp, in_dim, out_dim, hidden_dim)

    y = output_block_forward(x, params, scale=scale)
    y = jax.block_until_ready(y)
    assert y.shape == (N, out_dim)

    # Tight check vs the precision-matched (bf16) reference.
    y_bf = reference_forward_bf16(x, params, scale=scale)
    assert jnp.allclose(y, y_bf, atol=1e-2, rtol=1e-2), \
        f"max |diff| vs bf16 ref = {float(jnp.max(jnp.abs(y - y_bf)))}"

    # Loose semantic check vs the full-f32 PyTorch-style reference.
    y_f32 = reference_forward_f32(x, params, scale=scale)
    assert jnp.allclose(y, y_f32, atol=1e-1, rtol=1e-1), \
        f"max |diff| vs f32 ref = {float(jnp.max(jnp.abs(y - y_f32)))}"

    print("KERNEL_OK")
</pallas_src>

<mosaic_0001>
module attributes {stable_mosaic.version = 11 : i64} {
  func.func @_lin1_kernel(%arg0: i32, %arg1: memref<16x128xbf16, #tpu.memory_space<vmem>>, %arg2: memref<128x128xbf16, #tpu.memory_space<vmem>>, %arg3: memref<16x128xbf16, #tpu.memory_space<vmem>>, %arg4: memref<1x1x128xf32, #tpu.memory_space<vmem>>, %arg5: memref<1x1x128xf32, #tpu.memory_space<vmem>>) attributes {dimension_semantics = [#tpu.dimension_semantics<parallel>], iteration_bounds = array<i64: 1>, scalar_prefetch = 0 : i64, scratch_operands = 0 : i64, tpu.core_type = #tpu.core_type<tc>, window_params = [{transform_indices = @transform_0, window_bounds = array<i64: 16, 128>}, {pipeline_mode = #tpu.pipeline_mode<synchronous>, transform_indices = @transform_1, window_bounds = array<i64: 128, 128>}, {transform_indices = @transform_2, window_bounds = array<i64: 16, 128>}, {transform_indices = @transform_3, window_bounds = array<i64: 1, 1, 128>}, {transform_indices = @transform_4, window_bounds = array<i64: 1, 1, 128>}]} {
    %c0 = arith.constant 0 : index
    %c0_0 = arith.constant 0 : index
    %0 = vector.load %arg1[%c0, %c0_0] : memref<16x128xbf16, #tpu.memory_space<vmem>>, vector<16x128xbf16>
    %c0_1 = arith.constant 0 : index
    %c0_2 = arith.constant 0 : index
    %1 = vector.load %arg2[%c0_1, %c0_2] : memref<128x128xbf16, #tpu.memory_space<vmem>>, vector<128x128xbf16>
    %cst = arith.constant dense<0.000000e+00> : vector<16x128xf32>
    %2 = tpu.matmul %0, %1, %cst {dimension_numbers = #tpu.dot_dimension_numbers<[1], [0], [0], [1], [0, 0, 1, 1], [], []>} : vector<16x128xbf16>, vector<128x128xbf16>, vector<16x128xf32> -> vector<16x128xf32>
    %3 = arith.truncf %2 : vector<16x128xf32> to vector<16x128xbf16>
    %c0_3 = arith.constant 0 : index
    %c0_4 = arith.constant 0 : index
    %4 = vector.load %arg3[%c0_3, %c0_4] : memref<16x128xbf16, #tpu.memory_space<vmem>>, vector<16x128xbf16>
    tpu.vector_store %arg3[%c0_3, %c0_4], %3 {strides = array<i32>} : memref<16x128xbf16, #tpu.memory_space<vmem>>, vector<16x128xbf16>,
    %5 = arith.extf %3 : vector<16x128xbf16> to vector<16x128xf32>
    %cst_5 = arith.constant dense<0.000000e+00> : vector<128xf32>
    %6 = vector.multi_reduction <add>, %5, %cst_5 [0] : vector<16x128xf32> to vector<128xf32>
    %7 = vector.shape_cast %6 : vector<128xf32> to vector<1x128xf32>
    %c0_6 = arith.constant 0 : index
    %c0_7 = arith.constant 0 : index
    %c0_8 = arith.constant 0 : index
    %8 = vector.load %arg4[%c0_6, %c0_7, %c0_8] : memref<1x1x128xf32, #tpu.memory_space<vmem>>, vector<1x1x128xf32>
    %9 = vector.shape_cast %8 : vector<1x1x128xf32> to vector<1x128xf32>
    %10 = vector.shape_cast %7 : vector<1x128xf32> to vector<1x1x128xf32>
    tpu.vector_store %arg4[%c0_6, %c0_7, %c0_8], %10 {strides = array<i32>} : memref<1x1x128xf32, #tpu.memory_space<vmem>>, vector<1x1x128xf32>,
    %11 = arith.mulf %5, %5 : vector<16x128xf32>
    %cst_9 = arith.constant dense<0.000000e+00> : vector<128xf32>
    %12 = vector.multi_reduction <add>, %11, %cst_9 [0] : vector<16x128xf32> to vector<128xf32>
    %13 = vector.shape_cast %12 : vector<128xf32> to vector<1x128xf32>
    %c0_10 = arith.constant 0 : index
    %c0_11 = arith.constant 0 : index
    %c0_12 = arith.constant 0 : index
    %14 = vector.load %arg5[%c0_10, %c0_11, %c0_12] : memref<1x1x128xf32, #tpu.memory_space<vmem>>, vector<1x1x128xf32>
    %15 = vector.shape_cast %14 : vector<1x1x128xf32> to vector<1x128xf32>
    %16 = vector.shape_cast %13 : vector<1x128xf32> to vector<1x1x128xf32>
    tpu.vector_store %arg5[%c0_10, %c0_11, %c0_12], %16 {strides = array<i32>} : memref<1x1x128xf32, #tpu.memory_space<vmem>>, vector<1x1x128xf32>,
    return
  }
  func.func @transform_0(%arg0: i32) -> (i32, i32) {
    %c0_i32 = arith.constant 0 : i32
    %c0_i32_0 = arith.constant 0 : i32
    return %arg0, %c0_i32 : i32, i32
  }
  func.func @transform_1(%arg0: i32) -> (i32, i32) {
    %c0_i32 = arith.constant 0 : i32
    %c0_i32_0 = arith.constant 0 : i32
    %c0_i32_1 = arith.constant 0 : i32
    return %c0_i32, %c0_i32_0 : i32, i32
  }
  func.func @transform_2(%arg0: i32) -> (i32, i32) {
    %c0_i32 = arith.constant 0 : i32
    %c0_i32_0 = arith.constant 0 : i32
    return %arg0, %c0_i32 : i32, i32
  }
  func.func @transform_3(%arg0: i32) -> (i32, i32, i32) {
    %c0_i32 = arith.constant 0 : i32
    %c0_i32_0 = arith.constant 0 : i32
    %c0_i32_1 = arith.constant 0 : i32
    return %arg0, %c0_i32, %c0_i32_0 : i32, i32, i32
  }
  func.func @transform_4(%arg0: i32) -> (i32, i32, i32) {
    %c0_i32 = arith.constant 0 : i32
    %c0_i32_0 = arith.constant 0 : i32
    %c0_i32_1 = arith.constant 0 : i32
    return %arg0, %c0_i32, %c0_i32_0 : i32, i32, i32
  }
}

module attributes {stable_mosaic.version = 11 : i64} {
  func.func @_lin1_kernel(%arg0: i32, %arg1: memref<16x128xbf16, #tpu.memory_space<vmem>>, %arg2: memref<128x128xbf16, #tpu.memory_space<vmem>>, %arg3: memref<16x128xbf16, #tpu.memory_space<vmem>>, %arg4: memref<1x1x128xf32, #tpu.memory_space<vmem>>, %arg5: memref<1x1x128xf32, #tpu.memory_space<vmem>>) attributes {dimension_semantics = [#tpu.dimension_semantics<parallel>], iteration_bounds = array<i64: 1>, scalar_prefetch = 0 : i64, scratch_operands = 0 : i64, tpu.core_type = #tpu.core_type<tc>, window_params = [{transform_indices = @transform_0, window_bounds = array<i64: 16, 128>}, {pipeline_mode = #tpu.pipeline_mode<synchronous>, transform_indices = @transform_1, window_bounds = array<i64: 128, 128>}, {transform_indices = @transform_2, window_bounds = array<i64: 16, 128>}, {transform_indices = @transform_3, window_bounds = array<i64: 1, 1, 128>}, {transform_indices = @transform_4, window_bounds = array<i64: 1, 1, 128>}]} {
    %c0 = arith.constant 0 : index
    %c0_0 = arith.constant 0 : index
    %0 = vector.load %arg1[%c0, %c0_0] : memref<16x128xbf16, #tpu.memory_space<vmem>>, vector<16x128xbf16>
    %c0_1 = arith.constant 0 : index
    %c0_2 = arith.constant 0 : index
    %1 = vector.load %arg2[%c0_1, %c0_2] : memref<128x128xbf16, #tpu.memory_space<vmem>>, vector<128x128xbf16>
    %cst = arith.constant dense<0.000000e+00> : vector<16x128xf32>
    %2 = tpu.matmul %0, %1, %cst {dimension_numbers = #tpu.dot_dimension_numbers<[1], [0], [0], [1], [0, 0, 1, 1], [], []>} : vector<16x128xbf16>, vector<128x128xbf16>, vector<16x128xf32> -> vector<16x128xf32>
    %3 = arith.truncf %2 : vector<16x128xf32> to vector<16x128xbf16>
    %c0_3 = arith.constant 0 : index
    %c0_4 = arith.constant 0 : index
    %4 = vector.load %arg3[%c0_3, %c0_4] : memref<16x128xbf16, #tpu.memory_space<vmem>>, vector<16x128xbf16>
    tpu.vector_store %arg3[%c0_3, %c0_4], %3 {strides = array<i32>} : memref<16x128xbf16, #tpu.memory_space<vmem>>, vector<16x128xbf16>,
    %5 = arith.extf %3 : vector<16x128xbf16> to vector<16x128xf32>
    %cst_5 = arith.constant dense<0.000000e+00> : vector<128xf32>
    %6 = vector.multi_reduction <add>, %5, %cst_5 [0] : vector<16x128xf32> to vector<128xf32>
    %7 = vector.shape_cast %6 : vector<128xf32> to vector<1x128xf32>
    %c0_6 = arith.constant 0 : index
    %c0_7 = arith.constant 0 : index
    %c0_8 = arith.constant 0 : index
    %8 = vector.load %arg4[%c0_6, %c0_7, %c0_8] : memref<1x1x128xf32, #tpu.memory_space<vmem>>, vector<1x1x128xf32>
    %9 = vector.shape_cast %8 : vector<1x1x128xf32> to vector<1x128xf32>
    %10 = vector.shape_cast %7 : vector<1x128xf32> to vector<1x1x128xf32>
    tpu.vector_store %arg4[%c0_6, %c0_7, %c0_8], %10 {strides = array<i32>} : memref<1x1x128xf32, #tpu.memory_space<vmem>>, vector<1x1x128xf32>,
    %11 = arith.mulf %5, %5 : vector<16x128xf32>
    %cst_9 = arith.constant dense<0.000000e+00> : vector<128xf32>
    %12 = vector.multi_reduction <add>, %11, %cst_9 [0] : vector<16x128xf32> to vector<128xf32>
    %13 = vector.shape_cast %12 : vector<128xf32> to vector<1x128xf32>
    %c0_10 = arith.constant 0 : index
    %c0_11 = arith.constant 0 : index
    %c0_12 = arith.constant 0 : index
    %14 = vector.load %arg5[%c0_10, %c0_11, %c0_12] : memref<1x1x128xf32, #tpu.memory_space<vmem>>, vector<1x1x128xf32>
    %15 = vector.shape_cast %14 : vector<1x1x128xf32> to vector<1x128xf32>
    %16 = vector.shape_cast %13 : vector<1x128xf32> to vector<1x1x128xf32>
    tpu.vector_store %arg5[%c0_10, %c0_11, %c0_12], %16 {strides = array<i32>} : memref<1x1x128xf32, #tpu.memory_space<vmem>>, vector<1x1x128xf32>,
    return
  }
  func.func @transform_0(%arg0: i32) -> (i32, i32) {
    %c0_i32 = arith.constant 0 : i32
    %c0_i32_0 = arith.constant 0 : i32
    return %arg0, %c0_i32 : i32, i32
  }
  func.func @transform_1(%arg0: i32) -> (i32, i32) {
    %c0_i32 = arith.constant 0 : i32
    %c0_i32_0 = arith.constant 0 : i32
    %c0_i32_1 = arith.constant 0 : i32
    return %c0_i32, %c0_i32_0 : i32, i32
  }
  func.func @transform_2(%arg0: i32) -> (i32, i32) {
    %c0_i32 = arith.constant 0 : i32
    %c0_i32_0 = arith.constant 0 : i32
    return %arg0, %c0_i32 : i32, i32
  }
  func.func @transform_3(%arg0: i32) -> (i32, i32, i32) {
    %c0_i32 = arith.constant 0 : i32
    %c0_i32_0 = arith.constant 0 : i32
    %c0_i32_1 = arith.constant 0 : i32
    return %arg0, %c0_i32, %c0_i32_0 : i32, i32, i32
  }
  func.func @transform_4(%arg0: i32) -> (i32, i32, i32) {
    %c0_i32 = arith.constant 0 : i32
    %c0_i32_0 = arith.constant 0 : i32
    %c0_i32_1 = arith.constant 0 : i32
    return %arg0, %c0_i32, %c0_i32_0 : i32, i32, i32
  }
}

</mosaic_0001>

<llo_original>
// kernel: tpu_custom_call.1
$region0: #{tpu_custom_call.1}
  #allocation0 [shape = 'u32[]', space=smem, size = 0x4, offset = 0x4, fixed_abs, tag = 'smem constant byte address 0x4 - core index']
  #allocation1 [shape = 'u32[144,128]{1,0:T(1,128)}', space=vmem, size = 0x12000, scoped, tag = 'internal scratch']
  %s0 = inlined_call_operand.hbm [shape: bf16[16,128], index: 0, kind: input, shape index: {}]
  %s1 = inlined_call_operand.hbm [shape: bf16[128,128], index: 1, kind: input, shape index: {}]
  %s2 = inlined_call_operand.hbm [shape: bf16[16,128], index: 2, kind: output, shape index: {0}]
  %s3 = inlined_call_operand.hbm [shape: f32[1,1,128], index: 3, kind: output, shape index: {1}]
  %s4 = inlined_call_operand.hbm [shape: f32[1,1,128], index: 4, kind: output, shape index: {2}]
  %5 = xla_tuple %s2, %s3, %s4
  %s6 = sld [smem:[#allocation0]]
  $region42: #{tpu_custom_call.1} parent=0
    _
  %s8 = ssub.s32 1, %s6
  %s9 = scalar_select 0, %s8, %s6
  $region1: #{tpu_custom_call.1} parent=0
    #allocation2 [shape = 'u8[4096]{0}', space=vmem, size = 0x1000, scoped, tag = 'input window, operand 0, single buffered']
    #allocation3 [shape = 's32[1]{0}', space=sflag, size = 0x4, scoped, tag = 'scoped memory for tpu_custom_call.1']
    #allocation4 [shape = 's32[1]{0}', space=sflag, size = 0x4, scoped, tag = 'scoped memory for tpu_custom_call.1']
    #allocation5 [shape = 'u8[32768]{0}', space=vmem, size = 0x8000, scoped, tag = 'input window, operand 1, single buffered']
    #allocation6 [shape = 's32[1]{0}', space=sflag, size = 0x4, scoped, tag = 'scoped memory for tpu_custom_call.1']
    #allocation7 [shape = 'u8[4096]{0}', space=vmem, size = 0x1000, scoped, tag = 'output window, operand 0, single buffered']
    #allocation8 [shape = 'u8[512]{0}', space=vmem, size = 0x400, scoped, tag = 'output window, operand 1, single buffered']
    #allocation9 [shape = 's32[1]{0}', space=sflag, size = 0x4, scoped, tag = 'scoped memory for tpu_custom_call.1']
    #allocation10 [shape = 'u8[512]{0}', space=vmem, size = 0x400, scoped, tag = 'output window, operand 2, single buffered']
    %10 = vsyncpa [#allocation3], 0
    %11 = vsyncpa [#allocation6], 0
    %12 = vsyncpa [#allocation4], 0
    %13 = vsyncpa [#allocation9], 0
    // Predicated region
    $region2: #{tpu_custom_call.1} parent=1 // pred_check
      _
    $region3: #{tpu_custom_call.1} parent=1 // pred_check_branch
      %15 = sbr.rel (0) target = $region5
    $region4: #{tpu_custom_call.1} parent=1 // pred_region
      %s17 = ssub.s32 128, 128
      %18 = vsyncadd [#allocation3], %s17
      %s19 = sshll.u32 [#allocation2], 4
      %s20 = int_to_ptr.vmem [resolvable:$true] %s19
      %25 = dma.hbm_to_vmem [thread:$0]  %s0, 128, %s20, [#allocation3], 64, 64, 4
    $region5: #{tpu_custom_call.1} parent=1 // pred_fallthru
      _
    // Predicated region
    $region6: #{tpu_custom_call.1} parent=1 // pred_check
      _
    $region7: #{tpu_custom_call.1} parent=1 // pred_check_branch
      %27 = sbr.rel (0) target = $region9
    $region8: #{tpu_custom_call.1} parent=1 // pred_region
      %s29 = ssub.s32 1024, 1024
      %30 = vsyncadd [#allocation6], %s29
      %s31 = sshll.u32 [#allocation5], 4
      %s32 = int_to_ptr.vmem [resolvable:$true] %s31
      %37 = dma.hbm_to_vmem [thread:$0]  %s1, 1024, %s32, [#allocation6], 64, 64, 4
    $region9: #{tpu_custom_call.1} parent=1 // pred_fallthru
      _
    // Predicated region
    $region10: #{tpu_custom_call.1} parent=1 // pred_check
      _
    $region11: #{tpu_custom_call.1} parent=1 // pred_check_branch
      %39 = sbr.rel (0) target = $region13
    $region12: #{tpu_custom_call.1} parent=1 // pred_region
      %40 = dma.done [#allocation3], 128
    $region13: #{tpu_custom_call.1} parent=1 // pred_fallthru
      _
    // Predicated region
    $region14: #{tpu_custom_call.1} parent=1 // pred_check
      _
    $region15: #{tpu_custom_call.1} parent=1 // pred_check_branch
      %42 = sbr.rel (0) target = $region17
    $region16: #{tpu_custom_call.1} parent=1 // pred_region
      %43 = dma.done [#allocation6], 1024
    $region17: #{tpu_custom_call.1} parent=1 // pred_fallthru
      _
    %v45 = vld [vmem:[#allocation2] sm:$0xf]
    %v46 = vld [vmem:[#allocation2 + $0x4] sm:$0xf]
    %v47 = vld [vmem:[#allocation5] sm:$0xf]
    %v48 = vld [vmem:[#allocation5 + $0x4] sm:$0xf]
    %v49 = vld [vmem:[#allocation5 + $0x8] sm:$0xf]
    %v50 = vld [vmem:[#allocation5 + $0xc] sm:$0xf]
    %v51 = vld [vmem:[#allocation5 + $0x10] sm:$0xf]
    %v52 = vld [vmem:[#allocation5 + $0x14] sm:$0xf]
    %v53 = vld [vmem:[#allocation5 + $0x18] sm:$0xf]
    %v54 = vld [vmem:[#allocation5 + $0x1c] sm:$0xf]
    %v55 = vld [vmem:[#allocation5 + $0x20] sm:$0xf]
    %v56 = vld [vmem:[#allocation5 + $0x24] sm:$0xf]
    %v57 = vld [vmem:[#allocation5 + $0x28] sm:$0xf]
    %v58 = vld [vmem:[#allocation5 + $0x2c] sm:$0xf]
    %v59 = vld [vmem:[#allocation5 + $0x30] sm:$0xf]
    %v60 = vld [vmem:[#allocation5 + $0x34] sm:$0xf]
    %v61 = vld [vmem:[#allocation5 + $0x38] sm:$0xf]
    %v62 = vld [vmem:[#allocation5 + $0x3c] sm:$0xf]
    %v65 = vunpack.c.l.b16 %v45
    %v66 = vunpack.c.l.b16 %v46
    %v67 = vpack.c.b16 %v66, %v65
    %v85 = vunpack.c.l.b16 %v47
    %v86 = vunpack.c.l.b16 %v48
    %v87 = vunpack.c.l.b16 %v49
    %v88 = vunpack.c.l.b16 %v50
    %v89 = vunpack.c.l.b16 %v51
    %v90 = vunpack.c.l.b16 %v52
    %v91 = vunpack.c.l.b16 %v53
    %v92 = vunpack.c.l.b16 %v54
    %v93 = vunpack.c.l.b16 %v55
    %v94 = vunpack.c.l.b16 %v56
    %v95 = vunpack.c.l.b16 %v57
    %v96 = vunpack.c.l.b16 %v58
    %v97 = vunpack.c.l.b16 %v59
    %v98 = vunpack.c.l.b16 %v60
    %v99 = vunpack.c.l.b16 %v61
    %v100 = vunpack.c.l.b16 %v62
    %v101 = vpack.c.b16 %v86, %v85
    %v102 = vpack.c.b16 %v88, %v87
    %v103 = vpack.c.b16 %v90, %v89
    %v104 = vpack.c.b16 %v92, %v91
    %v105 = vpack.c.b16 %v94, %v93
    %v106 = vpack.c.b16 %v96, %v95
    %v107 = vpack.c.b16 %v98, %v97
    %v108 = vpack.c.b16 %v100, %v99
    %117 = vmatprep.subr.bf16.mxu0 0
    %118 = vmatpush1.bf16.msra.mxu0 %v101
    %119 = vmatprep.subr.bf16.mxu0 0
    %120 = vmatpush1.bf16.msra.mxu0 %v102
    %121 = vmatprep.subr.bf16.mxu0 0
    %122 = vmatpush1.bf16.msra.mxu0 %v103
    %123 = vmatprep.subr.bf16.mxu0 0
    %124 = vmatpush1.bf16.msra.mxu0 %v104
    %125 = vmatprep.subr.bf16.mxu0 0
    %126 = vmatpush1.bf16.msra.mxu0 %v105
    %127 = vmatprep.subr.bf16.mxu0 0
    %128 = vmatpush1.bf16.msra.mxu0 %v106
    %129 = vmatprep.subr.bf16.mxu0 0
    %130 = vmatpush1.bf16.msra.mxu0 %v107
    %131 = vmatprep.subr.bf16.mxu0 0
    %132 = vmatpush1.bf16.msra.mxu0 %v108
    %133 = vmatprep.subr.bf16.mxu0 0
    %134 = vmatpush1.bf16.msra.mxu0 0
    %135 = vmatprep.subr.bf16.mxu0 0
    %136 = vmatpush1.bf16.msra.mxu0 0
    %137 = vmatprep.subr.bf16.mxu0 0
    %138 = vmatpush1.bf16.msra.mxu0 0
    %139 = vmatprep.subr.bf16.mxu0 0
    %140 = vmatpush1.bf16.msra.mxu0 0
    %141 = vmatprep.subr.bf16.mxu0 0
    %142 = vmatpush1.bf16.msra.mxu0 0
    %143 = vmatprep.subr.bf16.mxu0 0
    %144 = vmatpush1.bf16.msra.mxu0 0
    %145 = vmatprep.subr.bf16.mxu0 0
    %146 = vmatpush1.bf16.msra.mxu0 0
    %147 = vmatprep.subr.bf16.mxu0 0
    %148 = vmatpush1.bf16.msra.mxu0 0
    %149 = vmatprep.mubr.bf16.mxu0 0
    %150 = vmatmul.mubr.bf16.gmra.mrb[0].mxu0 %v67
    %v151 = vpop.f32.mrb[0].mxu0
    %v152 = vadd.f32 0.0, %v151
    %v153 = vpop.f32.mrb[0].mxu0
    %v154 = vpop.f32.mrb[0].mxu0
    %v155 = vadd.f32 0.0, %v154
    %v156 = vpop.f32.mrb[0].mxu0
    %157 = vdwg.mxu0
    %v158 = vpack.c.bf16 %v155, %v152
    %v160 = vunpack.c.l.b16 %v158
    %v161 = vunpack.c.h.b16 %v158
    %v162 = vpack.c.b16 %v160, %v160
    %v163 = vpack.c.b16 %v161, %v161
    %166 = vst [vmem:[#allocation7] sm:$0xf] %v162
    %167 = vst [vmem:[#allocation7 + $0x4] sm:$0xf] %v163
    %v168 = vunpack.c.l.bf16 %v158
    %v169 = vunpack.c.h.bf16 %v158
    %v170 = vadd.f32 %v168, %v169
    %v171 = vrot.slane %v170, 4
    %v172 = vadd.f32 %v170, %v171
    %v173 = vrot.slane %v172, 2
    %v174 = vadd.f32 %v172, %v173
    %v175 = vrot.slane %v174, 1
    %v176 = vadd.f32 %v174, %v175
    %177 = vst [vmem:[#allocation8] sm:$0x1] %v176
    %v178 = vmul.f32 %v168, %v168
    %v179 = vmul.f32 %v169, %v169
    %v180 = vadd.f32 %v178, %v179
    %v181 = vrot.slane %v180, 4
    %v182 = vadd.f32 %v180, %v181
    %v183 = vrot.slane %v182, 2
    %v184 = vadd.f32 %v182, %v183
    %v185 = vrot.slane %v184, 1
    %v186 = vadd.f32 %v184, %v185
    %187 = vst [vmem:[#allocation10] sm:$0x1] %v186
    // Predicated region
    $region18: #{tpu_custom_call.1} parent=1 // pred_check
      _
    $region19: #{tpu_custom_call.1} parent=1 // pred_check_branch
      %189 = sbr.rel (0) target = $region21
    $region20: #{tpu_custom_call.1} parent=1 // pred_region
      %s191 = ssub.s32 128, 128
      %192 = vsyncadd [#allocation4], %s191
      %s193 = sshll.u32 [#allocation7], 4
      %s194 = int_to_ptr.vmem [resolvable:$true] %s193
      %199 = dma.vmem_to_hbm [thread:$0]  %s194, 128, %s2, [#allocation4], 64, 64, 4
    $region21: #{tpu_custom_call.1} parent=1 // pred_fallthru
      _
    // Predicated region
    $region22: #{tpu_custom_call.1} parent=1 // pred_check
      _
    $region23: #{tpu_custom_call.1} parent=1 // pred_check_branch
      %201 = sbr.rel (0) target = $region25
    $region24: #{tpu_custom_call.1} parent=1 // pred_region
      %s203 = ssub.s32 16, 16
      %204 = vsyncadd [#allocation9], %s203
      %s206 = sshll.u32 [#allocation8], 4
      %s207 = int_to_ptr.vmem [resolvable:$true] %s206
      %209 = dma.vmem_to_hbm [thread:$0]  %s207, 16, %s3, [#allocation9]
    $region25: #{tpu_custom_call.1} parent=1 // pred_fallthru
      _
    // Predicated region
    $region26: #{tpu_custom_call.1} parent=1 // pred_check
      _
    $region27: #{tpu_custom_call.1} parent=1 // pred_check_branch
      %211 = sbr.rel (0) target = $region29
    $region28: #{tpu_custom_call.1} parent=1 // pred_region
      %s213 = ssub.s32 16, 16
      %214 = vsyncadd [#allocation9], %s213
      %s216 = sshll.u32 [#allocation10], 4
      %s217 = int_to_ptr.vmem [resolvable:$true] %s216
      %219 = dma.vmem_to_hbm [thread:$0]  %s217, 16, %s4, [#allocation9]
    $region29: #{tpu_custom_call.1} parent=1 // pred_fallthru
      _
    // Predicated region
    $region30: #{tpu_custom_call.1} parent=1 // pred_check
      _
    $region31: #{tpu_custom_call.1} parent=1 // pred_check_branch
      %221 = sbr.rel (0) target = $region33
    $region32: #{tpu_custom_call.1} parent=1 // pred_region
      %222 = dma.done [#allocation4], 128
    $region33: #{tpu_custom_call.1} parent=1 // pred_fallthru
      _
    // Predicated region
    $region34: #{tpu_custom_call.1} parent=1 // pred_check
      _
    $region35: #{tpu_custom_call.1} parent=1 // pred_check_branch
      %224 = sbr.rel (0) target = $region37
    $region36: #{tpu_custom_call.1} parent=1 // pred_region
      %225 = dma.done [#allocation9], 16
    $region37: #{tpu_custom_call.1} parent=1 // pred_fallthru
      _
    // Predicated region
    $region38: #{tpu_custom_call.1} parent=1 // pred_check
      _
    $region39: #{tpu_custom_call.1} parent=1 // pred_check_branch
      %227 = sbr.rel (0) target = $region41
    $region40: #{tpu_custom_call.1} parent=1 // pred_region
      %228 = dma.done [#allocation9], 16
    $region41: #{tpu_custom_call.1} parent=1 // pred_fallthru
      _
    %229 = vsyncpa [#allocation3], 1
    %230 = vsyncpa [#allocation6], 1
    %231 = vsyncpa [#allocation4], 1
    %232 = vsyncpa [#allocation9], 1

// kernel: tpu_custom_call.1
$region0: #{tpu_custom_call.1}
  #allocation0 [shape = 'u32[]', space=smem, size = 0x4, offset = 0x4, fixed_abs, tag = 'smem constant byte address 0x4 - core index']
  #allocation1 [shape = 'u32[144,128]{1,0:T(1,128)}', space=vmem, size = 0x12000, scoped, tag = 'internal scratch']
  %s0 = inlined_call_operand.hbm [shape: bf16[16,128], index: 0, kind: input, shape index: {}]
  %s1 = inlined_call_operand.hbm [shape: bf16[128,128], index: 1, kind: input, shape index: {}]
  %s2 = inlined_call_operand.hbm [shape: bf16[16,128], index: 2, kind: output, shape index: {0}]
  %s3 = inlined_call_operand.hbm [shape: f32[1,1,128], index: 3, kind: output, shape index: {1}]
  %s4 = inlined_call_operand.hbm [shape: f32[1,1,128], index: 4, kind: output, shape index: {2}]
  %5 = xla_tuple %s2, %s3, %s4
  %s6 = sld [smem:[#allocation0]]
  $region42: #{tpu_custom_call.1} parent=0
    _
  %s8 = ssub.s32 1, %s6
  %s9 = scalar_select 0, %s8, %s6
  $region1: #{tpu_custom_call.1} parent=0
    #allocation2 [shape = 'u8[4096]{0}', space=vmem, size = 0x1000, scoped, tag = 'input window, operand 0, single buffered']
    #allocation3 [shape = 's32[1]{0}', space=sflag, size = 0x4, scoped, tag = 'scoped memory for tpu_custom_call.1']
    #allocation4 [shape = 's32[1]{0}', space=sflag, size = 0x4, scoped, tag = 'scoped memory for tpu_custom_call.1']
    #allocation5 [shape = 'u8[32768]{0}', space=vmem, size = 0x8000, scoped, tag = 'input window, operand 1, single buffered']
    #allocation6 [shape = 's32[1]{0}', space=sflag, size = 0x4, scoped, tag = 'scoped memory for tpu_custom_call.1']
    #allocation7 [shape = 'u8[4096]{0}', space=vmem, size = 0x1000, scoped, tag = 'output window, operand 0, single buffered']
    #allocation8 [shape = 'u8[512]{0}', space=vmem, size = 0x400, scoped, tag = 'output window, operand 1, single buffered']
    #allocation9 [shape = 's32[1]{0}', space=sflag, size = 0x4, scoped, tag = 'scoped memory for tpu_custom_call.1']
    #allocation10 [shape = 'u8[512]{0}', space=vmem, size = 0x400, scoped, tag = 'output window, operand 2, single buffered']
    %10 = vsyncpa [#allocation3], 0
    %11 = vsyncpa [#allocation6], 0
    %12 = vsyncpa [#allocation4], 0
    %13 = vsyncpa [#allocation9], 0
    // Predicated region
    $region2: #{tpu_custom_call.1} parent=1 // pred_check
      _
    $region3: #{tpu_custom_call.1} parent=1 // pred_check_branch
      %15 = sbr.rel (0) target = $region5
    $region4: #{tpu_custom_call.1} parent=1 // pred_region
      %s17 = ssub.s32 128, 128
      %18 = vsyncadd [#allocation3], %s17
      %s19 = sshll.u32 [#allocation2], 4
      %s20 = int_to_ptr.vmem [resolvable:$true] %s19
      %25 = dma.hbm_to_vmem [thread:$0]  %s0, 128, %s20, [#allocation3], 64, 64, 4
    $region5: #{tpu_custom_call.1} parent=1 // pred_fallthru
      _
    // Predicated region
    $region6: #{tpu_custom_call.1} parent=1 // pred_check
      _
    $region7: #{tpu_custom_call.1} parent=1 // pred_check_branch
      %27 = sbr.rel (0) target = $region9
    $region8: #{tpu_custom_call.1} parent=1 // pred_region
      %s29 = ssub.s32 1024, 1024
      %30 = vsyncadd [#allocation6], %s29
      %s31 = sshll.u32 [#allocation5], 4
      %s32 = int_to_ptr.vmem [resolvable:$true] %s31
      %37 = dma.hbm_to_vmem [thread:$0]  %s1, 1024, %s32, [#allocation6], 64, 64, 4
    $region9: #{tpu_custom_call.1} parent=1 // pred_fallthru
      _
    // Predicated region
    $region10: #{tpu_custom_call.1} parent=1 // pred_check
      _
    $region11: #{tpu_custom_call.1} parent=1 // pred_check_branch
      %39 = sbr.rel (0) target = $region13
    $region12: #{tpu_custom_call.1} parent=1 // pred_region
      %40 = dma.done [#allocation3], 128
    $region13: #{tpu_custom_call.1} parent=1 // pred_fallthru
      _
    // Predicated region
    $region14: #{tpu_custom_call.1} parent=1 // pred_check
      _
    $region15: #{tpu_custom_call.1} parent=1 // pred_check_branch
      %42 = sbr.rel (0) target = $region17
    $region16: #{tpu_custom_call.1} parent=1 // pred_region
      %43 = dma.done [#allocation6], 1024
    $region17: #{tpu_custom_call.1} parent=1 // pred_fallthru
      _
    %v45 = vld [vmem:[#allocation2] sm:$0xf]
    %v46 = vld [vmem:[#allocation2 + $0x4] sm:$0xf]
    %v47 = vld [vmem:[#allocation5] sm:$0xf]
    %v48 = vld [vmem:[#allocation5 + $0x4] sm:$0xf]
    %v49 = vld [vmem:[#allocation5 + $0x8] sm:$0xf]
    %v50 = vld [vmem:[#allocation5 + $0xc] sm:$0xf]
    %v51 = vld [vmem:[#allocation5 + $0x10] sm:$0xf]
    %v52 = vld [vmem:[#allocation5 + $0x14] sm:$0xf]
    %v53 = vld [vmem:[#allocation5 + $0x18] sm:$0xf]
    %v54 = vld [vmem:[#allocation5 + $0x1c] sm:$0xf]
    %v55 = vld [vmem:[#allocation5 + $0x20] sm:$0xf]
    %v56 = vld [vmem:[#allocation5 + $0x24] sm:$0xf]
    %v57 = vld [vmem:[#allocation5 + $0x28] sm:$0xf]
    %v58 = vld [vmem:[#allocation5 + $0x2c] sm:$0xf]
    %v59 = vld [vmem:[#allocation5 + $0x30] sm:$0xf]
    %v60 = vld [vmem:[#allocation5 + $0x34] sm:$0xf]
    %v61 = vld [vmem:[#allocation5 + $0x38] sm:$0xf]
    %v62 = vld [vmem:[#allocation5 + $0x3c] sm:$0xf]
    %v65 = vunpack.c.l.b16 %v45
    %v66 = vunpack.c.l.b16 %v46
    %v67 = vpack.c.b16 %v66, %v65
    %v85 = vunpack.c.l.b16 %v47
    %v86 = vunpack.c.l.b16 %v48
    %v87 = vunpack.c.l.b16 %v49
    %v88 = vunpack.c.l.b16 %v50
    %v89 = vunpack.c.l.b16 %v51
    %v90 = vunpack.c.l.b16 %v52
    %v91 = vunpack.c.l.b16 %v53
    %v92 = vunpack.c.l.b16 %v54
    %v93 = vunpack.c.l.b16 %v55
    %v94 = vunpack.c.l.b16 %v56
    %v95 = vunpack.c.l.b16 %v57
    %v96 = vunpack.c.l.b16 %v58
    %v97 = vunpack.c.l.b16 %v59
    %v98 = vunpack.c.l.b16 %v60
    %v99 = vunpack.c.l.b16 %v61
    %v100 = vunpack.c.l.b16 %v62
    %v101 = vpack.c.b16 %v86, %v85
    %v102 = vpack.c.b16 %v88, %v87
    %v103 = vpack.c.b16 %v90, %v89
    %v104 = vpack.c.b16 %v92, %v91
    %v105 = vpack.c.b16 %v94, %v93
    %v106 = vpack.c.b16 %v96, %v95
    %v107 = vpack.c.b16 %v98, %v97
    %v108 = vpack.c.b16 %v100, %v99
    %117 = vmatprep.subr.bf16.mxu0 0
    %118 = vmatpush1.bf16.msra.mxu0 %v101
    %119 = vmatprep.subr.bf16.mxu0 0
    %120 = vmatpush1.bf16.msra.mxu0 %v102
    %121 = vmatprep.subr.bf16.mxu0 0
    %122 = vmatpush1.bf16.msra.mxu0 %v103
    %123 = vmatprep.subr.bf16.mxu0 0
    %124 = vmatpush1.bf16.msra.mxu0 %v104
    %125 = vmatprep.subr.bf16.mxu0 0
    %126 = vmatpush1.bf16.msra.mxu0 %v105
    %127 = vmatprep.subr.bf16.mxu0 0
    %128 = vmatpush1.bf16.msra.mxu0 %v106
    %129 = vmatprep.subr.bf16.mxu0 0
    %130 = vmatpush1.bf16.msra.mxu0 %v107
    %131 = vmatprep.subr.bf16.mxu0 0
    %132 = vmatpush1.bf16.msra.mxu0 %v108
    %133 = vmatprep.subr.bf16.mxu0 0
    %134 = vmatpush1.bf16.msra.mxu0 0
    %135 = vmatprep.subr.bf16.mxu0 0
    %136 = vmatpush1.bf16.msra.mxu0 0
    %137 = vmatprep.subr.bf16.mxu0 0
    %138 = vmatpush1.bf16.msra.mxu0 0
    %139 = vmatprep.subr.bf16.mxu0 0
    %140 = vmatpush1.bf16.msra.mxu0 0
    %141 = vmatprep.subr.bf16.mxu0 0
    %142 = vmatpush1.bf16.msra.mxu0 0
    %143 = vmatprep.subr.bf16.mxu0 0
    %144 = vmatpush1.bf16.msra.mxu0 0
    %145 = vmatprep.subr.bf16.mxu0 0
    %146 = vmatpush1.bf16.msra.mxu0 0
    %147 = vmatprep.subr.bf16.mxu0 0
    %148 = vmatpush1.bf16.msra.mxu0 0
    %149 = vmatprep.mubr.bf16.mxu0 0
    %150 = vmatmul.mubr.bf16.gmra.mrb[0].mxu0 %v67
    %v151 = vpop.f32.mrb[0].mxu0
    %v152 = vadd.f32 0.0, %v151
    %v153 = vpop.f32.mrb[0].mxu0
    %v154 = vpop.f32.mrb[0].mxu0
    %v155 = vadd.f32 0.0, %v154
    %v156 = vpop.f32.mrb[0].mxu0
    %157 = vdwg.mxu0
    %v158 = vpack.c.bf16 %v155, %v152
    %v160 = vunpack.c.l.b16 %v158
    %v161 = vunpack.c.h.b16 %v158
    %v162 = vpack.c.b16 %v160, %v160
    %v163 = vpack.c.b16 %v161, %v161
    %166 = vst [vmem:[#allocation7] sm:$0xf] %v162
    %167 = vst [vmem:[#allocation7 + $0x4] sm:$0xf] %v163
    %v168 = vunpack.c.l.bf16 %v158
    %v169 = vunpack.c.h.bf16 %v158
    %v170 = vadd.f32 %v168, %v169
    %v171 = vrot.slane %v170, 4
    %v172 = vadd.f32 %v170, %v171
    %v173 = vrot.slane %v172, 2
    %v174 = vadd.f32 %v172, %v173
    %v175 = vrot.slane %v174, 1
    %v176 = vadd.f32 %v174, %v175
    %177 = vst [vmem:[#allocation8] sm:$0x1] %v176
    %v178 = vmul.f32 %v168, %v168
    %v179 = vmul.f32 %v169, %v169
    %v180 = vadd.f32 %v178, %v179
    %v181 = vrot.slane %v180, 4
    %v182 = vadd.f32 %v180, %v181
    %v183 = vrot.slane %v182, 2
    %v184 = vadd.f32 %v182, %v183
    %v185 = vrot.slane %v184, 1
    %v186 = vadd.f32 %v184, %v185
    %187 = vst [vmem:[#allocation10] sm:$0x1] %v186
    // Predicated region
    $region18: #{tpu_custom_call.1} parent=1 // pred_check
      _
    $region19: #{tpu_custom_call.1} parent=1 // pred_check_branch
      %189 = sbr.rel (0) target = $region21
    $region20: #{tpu_custom_call.1} parent=1 // pred_region
      %s191 = ssub.s32 128, 128
      %192 = vsyncadd [#allocation4], %s191
      %s193 = sshll.u32 [#allocation7], 4
      %s194 = int_to_ptr.vmem [resolvable:$true] %s193
      %199 = dma.vmem_to_hbm [thread:$0]  %s194, 128, %s2, [#allocation4], 64, 64, 4
    $region21: #{tpu_custom_call.1} parent=1 // pred_fallthru
      _
    // Predicated region
    $region22: #{tpu_custom_call.1} parent=1 // pred_check
      _
    $region23: #{tpu_custom_call.1} parent=1 // pred_check_branch
      %201 = sbr.rel (0) target = $region25
    $region24: #{tpu_custom_call.1} parent=1 // pred_region
      %s203 = ssub.s32 16, 16
      %204 = vsyncadd [#allocation9], %s203
      %s206 = sshll.u32 [#allocation8], 4
      %s207 = int_to_ptr.vmem [resolvable:$true] %s206
      %209 = dma.vmem_to_hbm [thread:$0]  %s207, 16, %s3, [#allocation9]
    $region25: #{tpu_custom_call.1} parent=1 // pred_fallthru
      _
    // Predicated region
    $region26: #{tpu_custom_call.1} parent=1 // pred_check
      _
    $region27: #{tpu_custom_call.1} parent=1 // pred_check_branch
      %211 = sbr.rel (0) target = $region29
    $region28: #{tpu_custom_call.1} parent=1 // pred_region
      %s213 = ssub.s32 16, 16
      %214 = vsyncadd [#allocation9], %s213
      %s216 = sshll.u32 [#allocation10], 4
      %s217 = int_to_ptr.vmem [resolvable:$true] %s216
      %219 = dma.vmem_to_hbm [thread:$0]  %s217, 16, %s4, [#allocation9]
    $region29: #{tpu_custom_call.1} parent=1 // pred_fallthru
      _
    // Predicated region
    $region30: #{tpu_custom_call.1} parent=1 // pred_check
      _
    $region31: #{tpu_custom_call.1} parent=1 // pred_check_branch
      %221 = sbr.rel (0) target = $region33
    $region32: #{tpu_custom_call.1} parent=1 // pred_region
      %222 = dma.done [#allocation4], 128
    $region33: #{tpu_custom_call.1} parent=1 // pred_fallthru
      _
    // Predicated region
    $region34: #{tpu_custom_call.1} parent=1 // pred_check
      _
    $region35: #{tpu_custom_call.1} parent=1 // pred_check_branch
      %224 = sbr.rel (0) target = $region37
    $region36: #{tpu_custom_call.1} parent=1 // pred_region
      %225 = dma.done [#allocation9], 16
    $region37: #{tpu_custom_call.1} parent=1 // pred_fallthru
      _
    // Predicated region
    $region38: #{tpu_custom_call.1} parent=1 // pred_check
      _
    $region39: #{tpu_custom_call.1} parent=1 // pred_check_branch
      %227 = sbr.rel (0) target = $region41
    $region40: #{tpu_custom_call.1} parent=1 // pred_region
      %228 = dma.done [#allocation9], 16
    $region41: #{tpu_custom_call.1} parent=1 // pred_fallthru
      _
    %229 = vsyncpa [#allocation3], 1
    %230 = vsyncpa [#allocation6], 1
    %231 = vsyncpa [#allocation4], 1
    %232 = vsyncpa [#allocation9], 1

</llo_original>
